<compile_context>
chip_gen: v6e
topology: v6e:2x2x1
jax: 0.10.0
libtpu: 0.0.40
codegen_flags: <defaults>
</compile_context>

<pallas_src>
import jax
import jax.numpy as jnp
from jax.experimental import pallas as pl
from jax.experimental.pallas import tpu as pltpu


def rotary_kernel(pos_ref, inv2_ref, x_ref, o_ref):
    # pos_ref:  (tr, 1) f32   positions for this row tile (row = (t, h) pair)
    # inv2_ref: (1, D)  f32   [inv_freq, -inv_freq]
    # x_ref:    (tr, D)       activations (input dtype)
    # o_ref:    (tr, D)       rotated output (input dtype)
    D = inv2_ref.shape[1]
    d = D // 2

    # Angle tables, lane-dense at width D from the start (f32, EUP).
    #   freqs = [theta, -theta]  ->  cos_cat = [cos, cos], sin_sgn = [sin, -sin]
    freqs = pos_ref[...] * inv2_ref[...]                 # (tr, D) f32
    cos_cat = jnp.cos(freqs).astype(o_ref.dtype)
    sin_sgn = jnp.sin(freqs).astype(o_ref.dtype)

    x = x_ref[...]                                       # (tr, D), native dtype
    # rotate-half: [x2, x1].  Static-slice concat == pltpu.roll(x, d, axis=1)
    # (single lane rotate on the XLU); works in compiled and interpret modes.
    x_rot = jnp.concatenate([x[:, d:], x[:, :d]], axis=-1)

    # first half:  x1*cos + x2*sin
    # second half: x2*cos - x1*sin
    # One dense, full-width store; math runs in the input dtype (as PyTorch).
    o_ref[...] = (x * cos_cat + x_rot * sin_sgn).astype(o_ref.dtype)


def _choose_block_rows(N, D, block_rows):
    """Row tile for the flattened (N=T*H, D) layout.

    Target ~4 MiB of f32-equivalent per buffer, multiple of 8 rows, and at
    least 2 blocks when there is enough work (v7x has 2 TensorCores).
    """
    if block_rows is None:
        target_bytes = 4 * 1024 * 1024
        block_rows = max(8, target_bytes // max(1, D * 4))
    tr = min(int(block_rows), N)
    if tr >= N:
        if N >= 16:
            tr = max(8, (((N + 1) // 2) // 8) * 8)   # >= 2 blocks
        else:
            tr = N                                   # single full-extent block
    else:
        tr = max(8, (tr // 8) * 8)                   # sublane-aligned tile
    return tr


def rotary_forward(x, x_pos, base=10000.0, block_rows=None):
    """Pallas implementation of Rotary.forward.

    x:     [1, T, H, D]   (any float dtype; D must be even)
    x_pos: [1, T]         (integer or float positions)
    """
    assert x.ndim == 4 and x.shape[0] == 1, "only batch size 1 supported"
    _, T, H, D = x.shape
    assert D % 2 == 0, "head dim must be even for rotate-half"
    dtype = x.dtype

    # Parameters, as in the module __init__ (plain JAX glue).
    inv_freq = 1.0 / (base ** (jnp.arange(0, D, 2, dtype=jnp.float32) / D))  # (D//2,)
    inv2 = jnp.concatenate([inv_freq, -inv_freq]).reshape(1, D)              # (1, D)

    # Flatten to (N, D): sublane axis dense even when H < 8; free reshape.
    N = T * H
    xs = x.reshape(N, D)
    pos = jnp.repeat(x_pos.reshape(T).astype(jnp.float32), H).reshape(N, 1)  # (N, 1)

    tr = _choose_block_rows(N, D, block_rows)
    num_blocks = pl.cdiv(N, tr)   # non-divisible last block handled by masking

    out = pl.pallas_call(
        rotary_kernel,
        out_shape=jax.ShapeDtypeStruct((N, D), dtype),
        grid_spec=pl.GridSpec(
            grid=(num_blocks,),
            in_specs=[
                pl.BlockSpec((tr, 1), lambda i: (i, 0)),     # positions
                pl.BlockSpec((1, D), lambda i: (0, 0)),      # [inv, -inv] (replicated)
                pl.BlockSpec((tr, D), lambda i: (i, 0)),     # activations
            ],
            out_specs=pl.BlockSpec((tr, D), lambda i: (i, 0)),
        ),
        compiler_params=pltpu.CompilerParams(
            dimension_semantics=("parallel",),
            vmem_limit_bytes=48 * 1024 * 1024,
        ),
    )(pos, inv2, xs)

    return out.reshape(1, T, H, D)


def rotary_reference(x, x_pos, base=10000.0):
    """Pure-JAX reference matching the PyTorch module exactly."""
    _, T, H, D = x.shape
    d = D // 2
    inv_freq = 1.0 / (base ** (jnp.arange(0, D, 2, dtype=jnp.float32) / D))
    t = x_pos.astype(jnp.float32).reshape(T)
    freqs = jnp.outer(t, inv_freq)                    # (T, d) f32
    cos = jnp.cos(freqs).astype(x.dtype)[None, :, None, :]
    sin = jnp.sin(freqs).astype(x.dtype)[None, :, None, :]
    x1 = x[..., :d]
    x2 = x[..., d:]
    y1 = x1 * cos + x2 * sin
    y2 = x1 * (-sin) + x2 * cos
    return jnp.concatenate([y1, y2], axis=3).astype(x.dtype)


if __name__ == "__main__":
    key = jax.random.PRNGKey(0)
    base = 10000.0

    # Case 1: f32, N = T*H = 32 rows evenly tiled (grid of 4), D lane-dense.
    B, T, H, D = 1, 16, 2, 128
    kx, key = jax.random.split(key)
    x = jax.random.normal(kx, (B, T, H, D), dtype=jnp.float32)
    x_pos = jnp.arange(T, dtype=jnp.int32)[None, :]
    out = jax.block_until_ready(rotary_forward(x, x_pos, base, block_rows=8))
    ref = rotary_reference(x, x_pos, base)
    assert out.shape == ref.shape and out.dtype == ref.dtype
    assert jnp.allclose(out, ref, atol=1e-4, rtol=1e-4), "f32 mismatch vs reference"

    # Case 2: bf16, ragged rows (N = 26 not a multiple of the tile) —
    # exercises the masked partial last block and the bf16 compute path.
    T2 = 13
    kx, key = jax.random.split(key)
    x2 = jax.random.normal(kx, (1, T2, H, D), dtype=jnp.bfloat16)
    x2_pos = (jnp.arange(T2, dtype=jnp.int32) + 5)[None, :]
    out2 = jax.block_until_ready(rotary_forward(x2, x2_pos, base))
    ref2 = rotary_reference(x2, x2_pos, base)
    assert out2.shape == ref2.shape and out2.dtype == ref2.dtype
    assert jnp.allclose(out2.astype(jnp.float32), ref2.astype(jnp.float32),
                        atol=5e-2, rtol=5e-2), "bf16 mismatch vs reference"

    print("KERNEL_OK")
</pallas_src>

<mosaic_0001>
module attributes {stable_mosaic.version = 11 : i64} {
  func.func @rotary_kernel(%arg0: i32, %arg1: memref<8x1xf32, #tpu.memory_space<vmem>>, %arg2: memref<1x128xf32, #tpu.memory_space<vmem>>, %arg3: memref<8x128xf32, #tpu.memory_space<vmem>>, %arg4: memref<8x128xf32, #tpu.memory_space<vmem>>) attributes {dimension_semantics = [#tpu.dimension_semantics<parallel>], iteration_bounds = array<i64: 4>, scalar_prefetch = 0 : i64, scratch_operands = 0 : i64, tpu.core_type = #tpu.core_type<tc>, window_params = [{transform_indices = @transform_0, window_bounds = array<i64: 8, 1>}, {pipeline_mode = #tpu.pipeline_mode<synchronous>, transform_indices = @transform_1, window_bounds = array<i64: 1, 128>}, {transform_indices = @transform_2, window_bounds = array<i64: 8, 128>}, {transform_indices = @transform_3, window_bounds = array<i64: 8, 128>}]} {
    %c0 = arith.constant 0 : index
    %c0_0 = arith.constant 0 : index
    %0 = vector.load %arg1[%c0, %c0_0] : memref<8x1xf32, #tpu.memory_space<vmem>>, vector<8x1xf32>
    %c0_1 = arith.constant 0 : index
    %c0_2 = arith.constant 0 : index
    %1 = vector.load %arg2[%c0_1, %c0_2] : memref<1x128xf32, #tpu.memory_space<vmem>>, vector<1x128xf32>
    %2 = vector.broadcast %0 : vector<8x1xf32> to vector<8x128xf32>
    %3 = vector.broadcast %1 : vector<1x128xf32> to vector<8x128xf32>
    %4 = arith.mulf %2, %3 : vector<8x128xf32>
    %5 = math.cos %4 : vector<8x128xf32>
    %6 = math.sin %4 : vector<8x128xf32>
    %c0_3 = arith.constant 0 : index
    %c0_4 = arith.constant 0 : index
    %7 = vector.load %arg3[%c0_3, %c0_4] : memref<8x128xf32, #tpu.memory_space<vmem>>, vector<8x128xf32>
    %8 = vector.extract_strided_slice %7 {offsets = [0, 64], sizes = [8, 64], strides = [1, 1]} : vector<8x128xf32> to vector<8x64xf32>
    %9 = vector.extract_strided_slice %7 {offsets = [0, 0], sizes = [8, 64], strides = [1, 1]} : vector<8x128xf32> to vector<8x64xf32>
    %10 = tpu.concatenate %8, %9 in 1 : vector<8x64xf32>, vector<8x64xf32> -> vector<8x128xf32>
    %11 = arith.mulf %7, %5 : vector<8x128xf32>
    %12 = arith.mulf %10, %6 : vector<8x128xf32>
    %13 = arith.addf %11, %12 : vector<8x128xf32>
    %c0_5 = arith.constant 0 : index
    %c0_6 = arith.constant 0 : index
    %14 = vector.load %arg4[%c0_5, %c0_6] : memref<8x128xf32, #tpu.memory_space<vmem>>, vector<8x128xf32>
    tpu.vector_store %arg4[%c0_5, %c0_6], %13 {strides = array<i32>} : memref<8x128xf32, #tpu.memory_space<vmem>>, vector<8x128xf32>,
    return
  }
  func.func @transform_0(%arg0: i32) -> (i32, i32) {
    %c0_i32 = arith.constant 0 : i32
    %c0_i32_0 = arith.constant 0 : i32
    return %arg0, %c0_i32 : i32, i32
  }
  func.func @transform_1(%arg0: i32) -> (i32, i32) {
    %c0_i32 = arith.constant 0 : i32
    %c0_i32_0 = arith.constant 0 : i32
    %c0_i32_1 = arith.constant 0 : i32
    return %c0_i32, %c0_i32_0 : i32, i32
  }
  func.func @transform_2(%arg0: i32) -> (i32, i32) {
    %c0_i32 = arith.constant 0 : i32
    %c0_i32_0 = arith.constant 0 : i32
    return %arg0, %c0_i32 : i32, i32
  }
  func.func @transform_3(%arg0: i32) -> (i32, i32) {
    %c0_i32 = arith.constant 0 : i32
    %c0_i32_0 = arith.constant 0 : i32
    return %arg0, %c0_i32 : i32, i32
  }
}

</mosaic_0001>

<llo_original>
// kernel: tpu_custom_call.1
$region0: #{tpu_custom_call.1}
  #allocation0 [shape = 'u32[]', space=smem, size = 0x4, offset = 0x4, fixed_abs, tag = 'smem constant byte address 0x4 - core index']
  #allocation1 [shape = 'u32[144,128]{1,0:T(1,128)}', space=vmem, size = 0x12000, scoped, tag = 'internal scratch']
  %s0 = inlined_call_operand.vmem [shape: f32[32,1], index: 0, kind: input, shape index: {}]
  %s1 = inlined_call_operand.vmem [shape: f32[1,128], index: 1, kind: input, shape index: {}]
  %s2 = inlined_call_operand.vmem [shape: f32[32,128], index: 2, kind: input, shape index: {}]
  %s3 = inlined_call_operand.hbm [shape: f32[32,128], index: 3, kind: output, shape index: {}]
  %s4 = sld [smem:[#allocation0]]
  $region45: #{tpu_custom_call.1} parent=0
    _
  %s6 = ssub.s32 1, %s4
  %s7 = scalar_select 0, %s6, %s4
  $region1: #{tpu_custom_call.1} parent=0
    #allocation2 [shape = 'u8[8192]{0}', space=vmem, size = 0x2000, scoped, tag = 'output window, operand 0']
    #allocation3 [shape = 's32[2]{0}', space=sflag, size = 0x8, scoped, tag = 'scoped memory for tpu_custom_call.1']
    %8 = vsyncpa [#allocation3], 0
    %s9 = scalar_lea.sflag [#allocation3], 1
    %10 = vsyncpa %s9, 0
    loop: start=0, step=1, limit=6
    $region2: #{tpu_custom_call.1} parent=1 // loop_pre_header
      _
    $region3: #{tpu_custom_call.1} parent=1 // loop_header
      %s12 = sphi 0, %s16
      %p13 = scmp.ge.s32.totalorder %s12, 6
      %s22 = sphi 0, %s24
      %s25 = sphi 0, %s22
      %s26 = sphi 0, %s25
      %s42 = sphi 0, %s26
      %s46 = sphi 0, %s46
      %s48 = sphi 0, %s46
      %s49 = sphi 0, %s48
      %s63 = sphi 0, %s49
      %s69 = sphi 0, %s71
      %s72 = sphi 0, %s69
      %s73 = sphi 0, %s72
      %s89 = sphi 0, %s73
      %s95 = sphi 0, %s97
      %s98 = sphi 0, %s95
      %s99 = sphi 0, %s98
      %s115 = sphi 0, %s99
    $region4: #{tpu_custom_call.1} parent=1 // loop_header_branch
      %15 = sbr.rel (%p13) target = $region8
    $region5: #{tpu_custom_call.1} parent=1 // loop_body
      %s17 = ssub.s32 %s12, 1
      %s18 = ssub.s32 %s12, 2
      %s19 = sadd.s32 %s12, 1
      %s20 = ssub.s32 %s12, %s19
      %p21 = scmp.eq.s32.totalorder %s20, 0
      %s23 = sadd.s32 %s22, 1
      %s24 = scalar_select %p21, %s22, %s23
      %p27 = pneg %p21
      %p28 = scmp.eq.s32.totalorder %s12, 3
      %p29 = por %p27, %p28
      %p30 = scmp.ne.s32.totalorder %s22, %s25
      %p31 = scmp.eq.s32.totalorder %s12, 0
      %p32 = por %p30, %p31
      %p33 = scmp.ne.s32.totalorder %s22, %s25
      %p34 = scmp.eq.s32.totalorder %s17, 3
      %p35 = por %p33, %p34
      %p36 = scmp.ne.s32.totalorder %s25, %s26
      %p37 = scmp.eq.s32.totalorder %s17, 0
      %p38 = por %p36, %p37
      %p39 = scmp.ne.s32.totalorder %s25, %s26
      %p40 = scmp.eq.s32.totalorder %s18, 3
      %p41 = por %p39, %p40
      %p43 = scmp.ne.s32.totalorder %s26, %s42
      %p44 = scmp.eq.s32.totalorder %s18, 0
      %p45 = por %p43, %p44
      %s47 = sadd.s32 %s46, 1
      %p50 = scmp.eq.s32.totalorder %s12, 3
      %p51 = scmp.ne.s32.totalorder %s46, %s48
      %p52 = scmp.eq.s32.totalorder %s12, 0
      %p53 = por %p51, %p52
      %p54 = scmp.ne.s32.totalorder %s46, %s48
      %p55 = scmp.eq.s32.totalorder %s17, 3
      %p56 = por %p54, %p55
      %p57 = scmp.ne.s32.totalorder %s48, %s49
      %p58 = scmp.eq.s32.totalorder %s17, 0
      %p59 = por %p57, %p58
      %p60 = scmp.ne.s32.totalorder %s48, %s49
      %p61 = scmp.eq.s32.totalorder %s18, 3
      %p62 = por %p60, %p61
      %p64 = scmp.ne.s32.totalorder %s49, %s63
      %p65 = scmp.eq.s32.totalorder %s18, 0
      %p66 = por %p64, %p65
      %s67 = ssub.s32 %s12, %s19
      %p68 = scmp.eq.s32.totalorder %s67, 0
      %s70 = sadd.s32 %s69, 1
      %s71 = scalar_select %p68, %s69, %s70
      %p74 = pneg %p68
      %p75 = scmp.eq.s32.totalorder %s12, 3
      %p76 = por %p74, %p75
      %p77 = scmp.ne.s32.totalorder %s69, %s72
      %p78 = scmp.eq.s32.totalorder %s12, 0
      %p79 = por %p77, %p78
      %p80 = scmp.ne.s32.totalorder %s69, %s72
      %p81 = scmp.eq.s32.totalorder %s17, 3
      %p82 = por %p80, %p81
      %p83 = scmp.ne.s32.totalorder %s72, %s73
      %p84 = scmp.eq.s32.totalorder %s17, 0
      %p85 = por %p83, %p84
      %p86 = scmp.ne.s32.totalorder %s72, %s73
      %p87 = scmp.eq.s32.totalorder %s18, 3
      %p88 = por %p86, %p87
      %p90 = scmp.ne.s32.totalorder %s73, %s89
      %p91 = scmp.eq.s32.totalorder %s18, 0
      %p92 = por %p90, %p91
      %s93 = ssub.s32 %s12, %s19
      %p94 = scmp.eq.s32.totalorder %s93, 0
      %s96 = sadd.s32 %s95, 1
      %s97 = scalar_select %p94, %s95, %s96
      %p100 = pneg %p94
      %p101 = scmp.eq.s32.totalorder %s12, 3
      %p102 = por %p100, %p101
      %p103 = scmp.ne.s32.totalorder %s95, %s98
      %p104 = scmp.eq.s32.totalorder %s12, 0
      %p105 = por %p103, %p104
      %p106 = scmp.ne.s32.totalorder %s95, %s98
      %p107 = scmp.eq.s32.totalorder %s17, 3
      %p108 = por %p106, %p107
      %p109 = scmp.ne.s32.totalorder %s98, %s99
      %p110 = scmp.eq.s32.totalorder %s17, 0
      %p111 = por %p109, %p110
      %p112 = scmp.ne.s32.totalorder %s98, %s99
      %p113 = scmp.eq.s32.totalorder %s18, 3
      %p114 = por %p112, %p113
      %p116 = scmp.ne.s32.totalorder %s99, %s115
      %p117 = scmp.eq.s32.totalorder %s18, 0
      %p118 = por %p116, %p117
      %p119 = scmp.le.s32.totalorder 1, %s12
      %p120 = scmp.lt.s32.totalorder %s12, 5
      %p121 = pnand %p119, %p120
      %p122 = pneg %p121
      // Predicated region
      $region9: #{tpu_custom_call.1} parent=5 // pred_check
        _
      $region10: #{tpu_custom_call.1} parent=5 // pred_check_branch
        %124 = sbr.rel (%p121) target = $region12
      $region11: #{tpu_custom_call.1} parent=5 // pred_region
        %s125 = ssub.s32 %s12, 1
        // Predicated region
        $region13: #{tpu_custom_call.1} parent=11 // pred_check
          %p126 = pneg %p59
        $region14: #{tpu_custom_call.1} parent=11 // pred_check_branch
          %128 = sbr.rel (%p126) target = $region16
        $region15: #{tpu_custom_call.1} parent=11 // pred_region
          _
        $region16: #{tpu_custom_call.1} parent=11 // pred_fallthru
          _
      $region12: #{tpu_custom_call.1} parent=5 // pred_fallthru
        _
      %p129 = scmp.lt.s32.totalorder %s12, 4
      // Predicated region
      $region17: #{tpu_custom_call.1} parent=5 // pred_check
        %p130 = pneg %p129
      $region18: #{tpu_custom_call.1} parent=5 // pred_check_branch
        %132 = sbr.rel (%p130) target = $region20
      $region19: #{tpu_custom_call.1} parent=5 // pred_region
        // Predicated region
        $region21: #{tpu_custom_call.1} parent=19 // pred_check
          %p133 = pneg %p32
        $region22: #{tpu_custom_call.1} parent=19 // pred_check_branch
          %135 = sbr.rel (%p133) target = $region24
        $region23: #{tpu_custom_call.1} parent=19 // pred_region
          %p136 = scmp.lt.s32.totalorder %s12, 3
          %s137 = scalar_select %p136, %s12, 3
          %s138 = smul.addr %s137, 8
          %s139 = scalar_lea.vmem %s0, %s138
        $region24: #{tpu_custom_call.1} parent=19 // pred_fallthru
          _
        // Predicated region
        $region25: #{tpu_custom_call.1} parent=19 // pred_check
          %p140 = pneg %p79
        $region26: #{tpu_custom_call.1} parent=19 // pred_check_branch
          %142 = sbr.rel (%p140) target = $region28
        $region27: #{tpu_custom_call.1} parent=19 // pred_region
          %p143 = scmp.lt.s32.totalorder %s12, 3
          %s144 = scalar_select %p143, %s12, 3
          %s145 = smul.addr %s144, 8
          %s146 = scalar_lea.vmem %s2, %s145
        $region28: #{tpu_custom_call.1} parent=19 // pred_fallthru
          _
      $region20: #{tpu_custom_call.1} parent=5 // pred_fallthru
        _
      %p147 = scmp.le.s32.totalorder 1, %s12
      %p148 = scmp.lt.s32.totalorder %s12, 5
      %p149 = pnand %p147, %p148
      %p150 = pneg %p149
      // Predicated region
      $region29: #{tpu_custom_call.1} parent=5 // pred_check
        _
      $region30: #{tpu_custom_call.1} parent=5 // pred_check_branch
        %152 = sbr.rel (%p149) target = $region32
      $region31: #{tpu_custom_call.1} parent=5 // pred_region
        %s153 = ssub.s32 %s12, 1
        %p154 = scmp.lt.s32.totalorder %s17, 3
        %s155 = scalar_select %p154, %s17, 3
        %s156 = smul.addr %s155, 8
        %s157 = scalar_lea.vmem %s0, %s156
        %p158 = pneg %p38
        %p159 = pneg %p35
        %p160 = pneg %p59
        %p161 = pneg %p56
        %p162 = scmp.lt.s32.totalorder %s17, 3
        %s163 = scalar_select %p162, %s17, 3
        %s164 = smul.addr %s163, 8
        %s165 = scalar_lea.vmem %s2, %s164
        %p166 = pneg %p85
        %p167 = pneg %p82
        %p168 = pneg %p111
        %p169 = pneg %p108
        %s170 = sand.u32 %s98, 1
        %s171 = scalar_lea.sflag [#allocation3], %s170
        %s172 = sand.u32 %s98, 1
        %s173 = smul.addr %s172, 8
        %s174 = scalar_lea.vmem [#allocation2], %s173
        %p175 = scmp.lt.s32.totalorder %s17, 3
        %s176 = scalar_select %p175, %s17, 3
        %s177 = smul.addr %s176, 8
        %s178 = scalar_lea.vmem %s0, %s177
        %p179 = scmp.lt.s32.totalorder %s17, 3
        %s180 = scalar_select %p179, %s17, 3
        %s181 = smul.addr %s180, 8
        %s182 = scalar_lea.vmem %s2, %s181
        %v183 = vld [vmem:[%s178] sm:$0xff]
        %v184 = vld [vmem:[%s1] sm:$0x1]
        %186 = vset.pattern.permute.xlu0 0
        %187 = vperm.xlu0 %186, %v183
        %v188 = vpop.permute.xlu0 %187
        %v191 = vlaneseq
        %v192 = vshrl.u32 %v191, 7
        %v193 = vsub.s32 0, %v192
        %v194 = vrot.slane %v184, %v193
        %v196 = vmul.f32 %v188, %v194
        %v197 = vand.u32 2147483647, %v196
        %vm198 = vcmp.le.f32.partialorder %v197, 0.7853982
        %vm199 = vcmp.lt.s32.totalorder %v196, 0
        %v200 = vand.u32 %v196, 2139095040
        %v201 = vshrl.u32 %v200, 23
        %v202 = vsub.s32 %v201, 127
        %v203 = vand.u32 2147483647, %v196
        %v204 = vand.u32 %v203, 8388607
        %v205 = vor.u32 %v204, 8388608
        %v206 = vsub.s32 0, %v205
        %v207 = vadd.s32 %v202, 1
        %vm208 = vcmp.gt.s32.totalorder %v207, 0
        %v209 = vsel %vm208, %v207, 0
        %v210 = vshrl.u32 %v209, 5
        %v211 = vand.u32 %v209, 31
        %v212 = vsub.s32 32, %v211
        %v213 = vshrl.u32 683565275, %v212
        %v214 = vshll.u32 683565275, %v211
        %v215 = vshrl.u32 2475754826, %v212
        %v216 = vor.u32 %v214, %v215
        %v217 = vshll.u32 2475754826, %v211
        %v218 = vshrl.u32 2131351028, %v212
        %v219 = vor.u32 %v217, %v218
        %v220 = vshll.u32 2131351028, %v211
        %v221 = vshrl.u32 2102212464, %v212
        %v222 = vor.u32 %v220, %v221
        %v223 = vshll.u32 2102212464, %v211
        %v224 = vshrl.u32 920167782, %v212
        %v225 = vor.u32 %v223, %v224
        %v226 = vshll.u32 920167782, %v211
        %v227 = vshrl.u32 1326507024, %v212
        %v228 = vor.u32 %v226, %v227
        %vm229 = vcmp.lt.s32.totalorder %v210, 1
        %vm230 = vcmp.lt.s32.totalorder %v210, 2
        %vm231 = vcmp.lt.s32.totalorder %v210, 3
        %vm232 = vcmp.lt.s32.totalorder %v210, 4
        %v233 = vsel %vm229, %v213, %v216
        %v234 = vsel %vm232, %v222, 2102212464
        %v235 = vsel %vm231, %v219, %v234
        %v236 = vsel %vm230, %v233, %v235
        %v237 = vsel %vm229, %v216, %v219
        %v238 = vsel %vm232, %v225, 920167782
        %v239 = vsel %vm231, %v222, %v238
        %v240 = vsel %vm230, %v237, %v239
        %v241 = vsel %vm229, %v219, %v222
        %v242 = vsel %vm232, %v228, 1326507024
        %v243 = vsel %vm231, %v225, %v242
        %v244 = vsel %vm230, %v241, %v243
        %v245 = vshll.u32 %v205, 8
        %v246 = vmul.u32.u64.compose %v245, %v244
        %v247 = vextract.low.u32 %v246
        %v248 = vextract.high.u32 %v246
        %v249 = vmul.u32.u64.compose %v245, %v240
        %v250 = vextract.low.u32 %v249
        %v251 = vextract.high.u32 %v249
        %v252 = vmul.u32 %v245, %v236
        %v253 = vadd.s32 %v248, %v250
        %vm254 = vc.u32 %v248, %v250
        %v255 = vadd.s32 %v251, 1
        %v256 = vsel %vm254, %v255, %v251
        %v257 = vadd.s32 %v252, %v256
        %v258 = vadd.s32 %v257, 536870912
        %v259 = vshrl.u32 %v258, 30
        %v260 = vshll.u32 %v259, 30
        %v261 = vsub.s32 %v257, %v260
        %vm262 = vcmp.lt.s32.totalorder %v261, 0
        %v263 = vsub.s32 0, %v261
        %v264 = vsel %vm262, %v263, %v261
        %v265 = vclz %v264
        %v266 = vsub.s32 %v265, 2
        %vm267 = vcmp.gt.s32.totalorder 0, %v266
        %v268 = vsel %vm267, 0, %v266
        %v269 = vsub.s32 32, %v268
        %v270 = vshll.u32 %v261, %v268
        %v271 = vshrl.u32 %v253, %v269
        %v272 = vor.u32 %v270, %v271
        %v273 = vsub.s32 4294967266, %v268
        %v274 = vadd.s32 %v273, 127
        %v275 = vshll.u32 %v274, 23
        %v276 = vor.u32 4788187, %v275
        %v277 = vand.u32 2147483647, %v276
        %v279 = vcvt.s32.f32 %v272
        %v280 = vmul.f32 %v279, %v277
        %v281 = vxor.u32 %v280, 2147483648
        %v282 = vsel %vm199, %v281, %v280
        %v283 = vsub.s32 4, %v259
        %v284 = vsel %vm199, %v283, %v259
        %v285 = vsel %vm198, %v196, %v282
        %v286 = vsel %vm198, 0, %v284
        %v287 = vcosq.f32.pop %v285
        %v288 = vsinq.f32.pop %v285
        %vm289 = vweird.f32 %v196
        %v290 = vand.u32 %v286, 3
        %vm291 = vcmp.lt.s32.totalorder %v290, 2
        %vm292 = vcmp.eq.s32.totalorder %v290, 0
        %v293 = vxor.u32 %v288, 2147483648
        %v294 = vsel %vm292, %v287, %v293
        %vm295 = vcmp.eq.s32.totalorder %v290, 2
        %v296 = vxor.u32 %v287, 2147483648
        %v297 = vsel %vm295, %v296, %v288
        %v298 = vsel %vm291, %v294, %v297
        %v299 = vsel %vm289, nan, %v298
        %v300 = vand.u32 2147483647, %v196
        %vm301 = vcmp.le.f32.partialorder %v300, 0.7853982
        %vm302 = vcmp.lt.s32.totalorder %v196, 0
        %v303 = vand.u32 %v196, 2139095040
        %v304 = vshrl.u32 %v303, 23
        %v305 = vsub.s32 %v304, 127
        %v306 = vand.u32 2147483647, %v196
        %v307 = vand.u32 %v306, 8388607
        %v308 = vor.u32 %v307, 8388608
        %v309 = vsub.s32 0, %v308
        %v310 = vadd.s32 %v305, 1
        %vm311 = vcmp.gt.s32.totalorder %v310, 0
        %v312 = vsel %vm311, %v310, 0
        %v313 = vshrl.u32 %v312, 5
        %v314 = vand.u32 %v312, 31
        %v315 = vsub.s32 32, %v314
        %v316 = vshrl.u32 683565275, %v315
        %v317 = vshll.u32 683565275, %v314
        %v318 = vshrl.u32 2475754826, %v315
        %v319 = vor.u32 %v317, %v318
        %v320 = vshll.u32 2475754826, %v314
        %v321 = vshrl.u32 2131351028, %v315
        %v322 = vor.u32 %v320, %v321
        %v323 = vshll.u32 2131351028, %v314
        %v324 = vshrl.u32 2102212464, %v315
        %v325 = vor.u32 %v323, %v324
        %v326 = vshll.u32 2102212464, %v314
        %v327 = vshrl.u32 920167782, %v315
        %v328 = vor.u32 %v326, %v327
        %v329 = vshll.u32 920167782, %v314
        %v330 = vshrl.u32 1326507024, %v315
        %v331 = vor.u32 %v329, %v330
        %vm332 = vcmp.lt.s32.totalorder %v313, 1
        %vm333 = vcmp.lt.s32.totalorder %v313, 2
        %vm334 = vcmp.lt.s32.totalorder %v313, 3
        %vm335 = vcmp.lt.s32.totalorder %v313, 4
        %v336 = vsel %vm332, %v316, %v319
        %v337 = vsel %vm335, %v325, 2102212464
        %v338 = vsel %vm334, %v322, %v337
        %v339 = vsel %vm333, %v336, %v338
        %v340 = vsel %vm332, %v319, %v322
        %v341 = vsel %vm335, %v328, 920167782
        %v342 = vsel %vm334, %v325, %v341
        %v343 = vsel %vm333, %v340, %v342
        %v344 = vsel %vm332, %v322, %v325
        %v345 = vsel %vm335, %v331, 1326507024
        %v346 = vsel %vm334, %v328, %v345
        %v347 = vsel %vm333, %v344, %v346
        %v348 = vshll.u32 %v308, 8
        %v349 = vmul.u32.u64.compose %v348, %v347
        %v350 = vextract.low.u32 %v349
        %v351 = vextract.high.u32 %v349
        %v352 = vmul.u32.u64.compose %v348, %v343
        %v353 = vextract.low.u32 %v352
        %v354 = vextract.high.u32 %v352
        %v355 = vmul.u32 %v348, %v339
        %v356 = vadd.s32 %v351, %v353
        %vm357 = vc.u32 %v351, %v353
        %v358 = vadd.s32 %v354, 1
        %v359 = vsel %vm357, %v358, %v354
        %v360 = vadd.s32 %v355, %v359
        %v361 = vadd.s32 %v360, 536870912
        %v362 = vshrl.u32 %v361, 30
        %v363 = vshll.u32 %v362, 30
        %v364 = vsub.s32 %v360, %v363
        %vm365 = vcmp.lt.s32.totalorder %v364, 0
        %v366 = vsub.s32 0, %v364
        %v367 = vsel %vm365, %v366, %v364
        %v368 = vclz %v367
        %v369 = vsub.s32 %v368, 2
        %vm370 = vcmp.gt.s32.totalorder 0, %v369
        %v371 = vsel %vm370, 0, %v369
        %v372 = vsub.s32 32, %v371
        %v373 = vshll.u32 %v364, %v371
        %v374 = vshrl.u32 %v356, %v372
        %v375 = vor.u32 %v373, %v374
        %v376 = vsub.s32 4294967266, %v371
        %v377 = vadd.s32 %v376, 127
        %v378 = vshll.u32 %v377, 23
        %v379 = vor.u32 4788187, %v378
        %v380 = vand.u32 2147483647, %v379
        %v382 = vcvt.s32.f32 %v375
        %v383 = vmul.f32 %v382, %v380
        %v384 = vxor.u32 %v383, 2147483648
        %v385 = vsel %vm302, %v384, %v383
        %v386 = vsub.s32 4, %v362
        %v387 = vsel %vm302, %v386, %v362
        %v388 = vsel %vm301, %v196, %v385
        %v389 = vsel %vm301, 0, %v387
        %v390 = vcosq.f32.pop %v388
        %v391 = vsinq.f32.pop %v388
        %vm392 = vweird.f32 %v196
        %v393 = vadd.s32 %v389, 3
        %v394 = vand.u32 %v393, 3
        %vm395 = vcmp.lt.s32.totalorder %v394, 2
        %vm396 = vcmp.eq.s32.totalorder %v394, 0
        %v397 = vxor.u32 %v391, 2147483648
        %v398 = vsel %vm396, %v390, %v397
        %vm399 = vcmp.eq.s32.totalorder %v394, 2
        %v400 = vxor.u32 %v390, 2147483648
        %v401 = vsel %vm399, %v400, %v391
        %v402 = vsel %vm395, %v398, %v401
        %v403 = vsel %vm392, nan, %v402
        %v404 = vld [vmem:[%s182] sm:$0xff]
        %406 = vrot.lane.b32.xlu0 %v404, 64
        %v407 = vpop.permute.xlu0 %406
        %v409 = vmul.f32 %v404, %v299
        %v410 = vmul.f32 %v407, %v403
        %v411 = vadd.f32 %v409, %v410
        %412 = vst [vmem:[%s174] sm:$0xff] %v411
        %s413 = sand.u32 %s98, 1
        %s414 = scalar_lea.sflag [#allocation3], %s413
        %s415 = sand.u32 %s98, 1
        %s416 = smul.addr %s415, 8
        %s417 = scalar_lea.vmem [#allocation2], %s416
        // Predicated region
        $region33: #{tpu_custom_call.1} parent=31 // pred_check
          %p418 = pneg %p108
        $region34: #{tpu_custom_call.1} parent=31 // pred_check_branch
          %420 = sbr.rel (%p418) target = $region36
        $region35: #{tpu_custom_call.1} parent=31 // pred_region
          %s422 = ssub.s32 128, 128
          %423 = vsyncadd %s414, %s422
          %s424 = smul.addr %s17, 128
          %s425 = scalar_lea.hbm %s3, %s424
          %s427 = sshll.u32 %s417, 4
          %s428 = int_to_ptr.vmem [resolvable:$true] %s427
          %430 = dma.vmem_to_hbm [thread:$0]  %s428, 128, %s425, %s414
        $region36: #{tpu_custom_call.1} parent=31 // pred_fallthru
          _
      $region32: #{tpu_custom_call.1} parent=5 // pred_fallthru
        _
      %p431 = scmp.le.s32.totalorder 2, %s12
      // Predicated region
      $region37: #{tpu_custom_call.1} parent=5 // pred_check
        %p432 = pneg %p431
      $region38: #{tpu_custom_call.1} parent=5 // pred_check_branch
        %434 = sbr.rel (%p432) target = $region40
      $region39: #{tpu_custom_call.1} parent=5 // pred_region
        %s435 = ssub.s32 %s12, 2
        // Predicated region
        $region41: #{tpu_custom_call.1} parent=39 // pred_check
          %p436 = pneg %p114
        $region42: #{tpu_custom_call.1} parent=39 // pred_check_branch
          %438 = sbr.rel (%p436) target = $region44
        $region43: #{tpu_custom_call.1} parent=39 // pred_region
          %s439 = sand.u32 %s99, 1
          %s440 = scalar_lea.sflag [#allocation3], %s439
          %s441 = sand.u32 %s99, 1
          %s442 = smul.addr %s441, 8
          %s443 = scalar_lea.vmem [#allocation2], %s442
          %444 = dma.done %s440, 128
        $region44: #{tpu_custom_call.1} parent=39 // pred_fallthru
          _
      $region40: #{tpu_custom_call.1} parent=5 // pred_fallthru
        _
    $region6: #{tpu_custom_call.1} parent=1 // loop_footer
      %s16 = sadd.s32 1, %s12
    $region7: #{tpu_custom_call.1} parent=1 // loop_footer_branch
      %11 = sbr.rel target = $region3
    $region8: #{tpu_custom_call.1} parent=1 // loop_exit
      _
    %445 = vsyncpa [#allocation3], 1
    %s446 = scalar_lea.sflag [#allocation3], 1
    %447 = vsyncpa %s446, 1

</llo_original>
